<compile_context>
chip_gen: v5e
topology: v5e:2x2
jax: 0.10.0
libtpu: 0.0.40
codegen_flags: <defaults>
</compile_context>

<pallas_src>
import math
import functools

import jax
import jax.numpy as jnp
from jax.experimental import pallas as pl
from jax.experimental.pallas import tpu as pltpu


# ---------------------------------------------------------------------------
# Paper formula for hidden-layer sizes (mirrors RNNIFDCom_PMC._calculate_hidden_dims)
# ---------------------------------------------------------------------------
def calculate_hidden_dims(n):
    if n <= 50:
        num_layers = 3
    elif n <= 100:
        num_layers = 4
    else:
        num_layers = 5
    if n % 10 == 0:
        neurons_per_layer = max(n, int(n * math.log(max(2, n)) / 10))
    else:
        n_mod = n % 10
        neurons_per_layer = max(n, int(n * math.log(max(2, n_mod))))
    return [neurons_per_layer] * num_layers


def _round_up(x, m):
    return (x + m - 1) // m * m


def _vmem_capacity_bytes():
    try:
        info = pltpu.get_tpu_info()
        cap = getattr(info, "vmem_capacity_bytes", None)
        if cap:
            return int(cap)
    except Exception:
        pass
    return 64 * 1024 * 1024  # conservative (v7x per-TC physical VMEM)


# ---------------------------------------------------------------------------
# Pallas kernel.
#   grid = (batch_tiles, k_tiles)   -- K axis tiles the FIRST layer only.
#   refs = (x_ref, w0, b0, w1, b1, ..., wL, bL, out_ref, acc_ref)
# First layer: f32 accumulator across the K axis (init at k==0, finalize +
# bias + tanh at k==last), remaining layers run entirely at the last K step.
# Matmul operands are cast to the weight dtype (bf16 by default); bias add
# and tanh stay f32; activations are carried in act_dtype between layers.
# ---------------------------------------------------------------------------
def mlp_kernel(*refs, act_dtype):
    x_ref = refs[0]
    out_ref = refs[-2]
    acc_ref = refs[-1]
    param_refs = refs[1:-2]
    n_layers = len(param_refs) // 2

    k = pl.program_id(1)
    nk = pl.num_programs(1)

    @pl.when(k == 0)
    def _():
        acc_ref[...] = jnp.zeros_like(acc_ref)

    w0 = param_refs[0][...]
    acc_ref[...] += jnp.dot(
        x_ref[...].astype(w0.dtype), w0, preferred_element_type=jnp.float32
    )

    @pl.when(k == nk - 1)
    def _():
        b0 = param_refs[1][...].astype(jnp.float32)
        # First hidden layer: finalize accumulator, bias add + tanh in f32.
        h = jnp.tanh(acc_ref[...] + b0).astype(act_dtype)
        for i in range(1, n_layers):
            w = param_refs[2 * i][...]
            b = param_refs[2 * i + 1][...].astype(jnp.float32)
            h = jnp.dot(h.astype(w.dtype), w, preferred_element_type=jnp.float32) + b
            if i < n_layers - 1:  # Tanh on hidden layers only (not final Linear)
                h = jnp.tanh(h).astype(act_dtype)
        out_ref[...] = h.astype(out_ref.dtype)


# ---------------------------------------------------------------------------
# Wrapper.
#   x       : (batch, input_dim) f32   -- streamed unpadded (no wrapper copy)
#   weights : list of (in_dim, out_dim) arrays (transpose of torch's (out,in))
#   biases  : list of (1, out_dim) arrays
# Layer OUTPUT dims are zero-padded to multiples of 128 (lane-dense stores /
# full-width MXU); zero padding keeps the math exact (tanh(0)=0, 0-rows of
# the next weight matrix).  The true output columns are sliced back outside.
# ---------------------------------------------------------------------------
@functools.partial(jax.jit, static_argnames=("block_m", "param_dtype", "act_dtype"))
def rnn_ifdcom_pmc_forward(x, weights, biases, *, block_m=512,
                           param_dtype=jnp.bfloat16, act_dtype=None):
    if act_dtype is None:
        act_dtype = param_dtype

    batch, in_dim = x.shape
    out_dim = weights[-1].shape[1]
    n_layers = len(weights)

    out_dims = [w.shape[1] for w in weights]
    out_dims_pad = [_round_up(d, 128) for d in out_dims]
    h0_pad = out_dims_pad[0]
    out_pad_dim = out_dims_pad[-1]

    itemsize_p = jnp.dtype(param_dtype).itemsize
    itemsize_x = jnp.dtype(x.dtype).itemsize

    # --- batch tiling: NO batch padding; Pallas masks the ragged last block ---
    tm = min(block_m, _round_up(batch, 8))
    if batch >= 16:
        # Ensure at least 2 batch tiles so megacore (v7x) can split the axis.
        tm = min(tm, _round_up(pl.cdiv(batch, 2), 8))
    tm = max(tm, 8)
    n_m = pl.cdiv(batch, tm)

    # --- VMEM budget (generation-aware, ~70% of physical per-TC capacity) ----
    vmem_cap = _vmem_capacity_bytes()
    vmem_budget = int(0.70 * vmem_cap)

    # Analytic estimate of the resident-W0 scheme (double-buffered blocks).
    rest_param_bytes = sum(out_dims_pad[i - 1] * out_dims_pad[i] * itemsize_p
                           for i in range(1, n_layers))
    rest_param_bytes += sum(8 * d * 4 for d in out_dims_pad)  # biases (sublane pad)
    act_headroom = 3 * tm * max(out_dims_pad) * 4
    acc_bytes = tm * h0_pad * 4
    need_resident = (2 * (tm * in_dim * itemsize_x
                          + tm * out_pad_dim * 4
                          + in_dim * h0_pad * itemsize_p
                          + rest_param_bytes)
                     + acc_bytes + act_headroom)

    # --- first-layer K tiling decision ---------------------------------------
    if need_resident <= vmem_budget:
        tk = in_dim                 # W0 resident, x streamed fully unpadded
        k_total = in_dim
        x_in = x
    else:
        # Large PMC graphs: block the first layer along K (zero-pad x / W0 to
        # a multiple of tk so no garbage enters the accumulation).
        tk = min(512, _round_up(in_dim, 128))
        k_total = _round_up(in_dim, tk)
        x_in = jnp.pad(x, ((0, 0), (0, k_total - in_dim)))
    n_k = k_total // tk

    # --- zero-pad parameters (tiny, done once per call) ----------------------
    w_pads, b_pads = [], []
    for i, (w, b) in enumerate(zip(weights, biases)):
        k_in = k_total if i == 0 else out_dims_pad[i - 1]
        n_out = out_dims_pad[i]
        wp = jnp.zeros((k_in, n_out), param_dtype)
        wp = wp.at[: w.shape[0], : w.shape[1]].set(w.astype(param_dtype))
        bp = jnp.zeros((1, n_out), jnp.float32)
        bp = bp.at[:, : b.shape[-1]].set(b.reshape(1, -1).astype(jnp.float32))
        w_pads.append(wp)
        b_pads.append(bp)

    # --- specs ----------------------------------------------------------------
    in_specs = [pl.BlockSpec((tm, tk), lambda i, k: (i, k))]
    args = [x_in]
    for li, (wp, bp) in enumerate(zip(w_pads, b_pads)):
        args.append(wp)
        args.append(bp)
        if li == 0:
            in_specs.append(pl.BlockSpec((tk, h0_pad), lambda i, k: (k, 0)))
        else:
            in_specs.append(pl.BlockSpec(wp.shape, lambda i, k: (0, 0)))
        in_specs.append(pl.BlockSpec(bp.shape, lambda i, k: (0, 0)))
    out_spec = pl.BlockSpec((tm, out_pad_dim), lambda i, k: (i, 0))

    # --- VMEM limit for the actual block layout -------------------------------
    actual_param_bytes = (tk * h0_pad * itemsize_p + rest_param_bytes)
    need = (2 * (tm * tk * itemsize_x
                 + tm * out_pad_dim * 4
                 + actual_param_bytes)
            + acc_bytes + act_headroom + (4 << 20))
    vmem_limit = int(min(vmem_budget, max(need, 16 * 1024 * 1024)))

    # --- advisory cost estimate ------------------------------------------------
    flops = 2 * batch * (k_total * h0_pad
                         + sum(out_dims_pad[i - 1] * out_dims_pad[i]
                               for i in range(1, n_layers)))
    transcendentals = batch * sum(out_dims_pad[:-1])
    param_bytes = sum(int(a.size) * a.dtype.itemsize for a in w_pads + b_pads)
    bytes_accessed = (batch * k_total * itemsize_x
                      + batch * out_pad_dim * 4
                      + param_bytes
                      + max(0, n_m - 1) * (k_total * h0_pad * itemsize_p if n_k > 1 else 0))

    out_pad = pl.pallas_call(
        functools.partial(mlp_kernel, act_dtype=act_dtype),
        out_shape=jax.ShapeDtypeStruct((batch, out_pad_dim), jnp.float32),
        grid=(n_m, n_k),
        in_specs=in_specs,
        out_specs=out_spec,
        scratch_shapes=[pltpu.VMEM((tm, h0_pad), jnp.float32)],
        compiler_params=pltpu.CompilerParams(
            dimension_semantics=("parallel", "arbitrary"),
            vmem_limit_bytes=vmem_limit,
        ),
        cost_estimate=pl.CostEstimate(
            flops=int(flops),
            transcendentals=int(transcendentals),
            bytes_accessed=int(bytes_accessed),
        ),
    )(*args)

    return out_pad[:, :out_dim]


# ---------------------------------------------------------------------------
# Deterministic parameter init (xavier_uniform weights, zero biases)
# ---------------------------------------------------------------------------
def init_params(key, dims):
    weights, biases = [], []
    for i in range(len(dims) - 1):
        fan_in, fan_out = dims[i], dims[i + 1]
        key, sub = jax.random.split(key)
        bound = math.sqrt(6.0 / (fan_in + fan_out))
        # Stored as (in_dim, out_dim) — transpose of torch's (out, in) layout.
        w = jax.random.uniform(
            sub, (fan_in, fan_out), minval=-bound, maxval=bound, dtype=jnp.float32
        )
        b = jnp.zeros((1, fan_out), dtype=jnp.float32)
        weights.append(w)
        biases.append(b)
    return weights, biases


if __name__ == "__main__":
    # Small PMC setup: n = |V(G)| = 8 nodes, complete-graph syndrome length
    # |C(G)| = n*(n-1) = 56 (directed comparisons under the PMC model).
    n_nodes = 8
    input_dim = n_nodes * (n_nodes - 1)            # 56
    output_dim = n_nodes                            # 8
    hidden_dims = calculate_hidden_dims(n_nodes)    # [16, 16, 16]
    dims = [input_dim] + hidden_dims + [output_dim]

    key = jax.random.PRNGKey(0)
    key, pkey, xkey, x2key = jax.random.split(key, 4)
    weights, biases = init_params(pkey, dims)

    def reference(xv):
        h = xv
        for i, (w, b) in enumerate(zip(weights, biases)):
            h = h @ w + b
            if i < len(weights) - 1:
                h = jnp.tanh(h)
        return h

    # --- test 1: batch=2 (single partial batch tile) --------------------------
    batch = 2
    raw = jax.random.bernoulli(xkey, p=0.5, shape=(batch, input_dim))
    x = jnp.where(raw, 0.5, -0.5).astype(jnp.float32)   # paper transform 0->-0.5, 1->0.5
    ref = reference(x)

    out_f32 = jax.block_until_ready(
        rnn_ifdcom_pmc_forward(x, tuple(weights), tuple(biases),
                               param_dtype=jnp.float32, act_dtype=jnp.float32))
    assert out_f32.shape == (batch, output_dim)
    assert jnp.allclose(out_f32, ref, atol=1e-4, rtol=1e-4)

    # default path: bf16 weights + bf16 inter-layer activations, f32 accumulate
    out_bf16 = jax.block_until_ready(
        rnn_ifdcom_pmc_forward(x, tuple(weights), tuple(biases)))
    assert out_bf16.shape == (batch, output_dim)
    assert jnp.allclose(out_bf16, ref, atol=5e-2, rtol=5e-2)

    # --- test 2: ragged batch with multiple batch tiles (masked last block) ---
    batch2 = 37
    raw2 = jax.random.bernoulli(x2key, p=0.5, shape=(batch2, input_dim))
    x2 = jnp.where(raw2, 0.5, -0.5).astype(jnp.float32)
    ref2 = reference(x2)

    out2 = jax.block_until_ready(
        rnn_ifdcom_pmc_forward(x2, tuple(weights), tuple(biases),
                               param_dtype=jnp.float32, act_dtype=jnp.float32))
    assert out2.shape == (batch2, output_dim)
    assert jnp.allclose(out2, ref2, atol=1e-4, rtol=1e-4)

    out2_bf16 = jax.block_until_ready(
        rnn_ifdcom_pmc_forward(x2, tuple(weights), tuple(biases)))
    assert jnp.allclose(out2_bf16, ref2, atol=5e-2, rtol=5e-2)

    print("KERNEL_OK")
</pallas_src>

<mosaic_0001>
module attributes {stable_mosaic.version = 11 : i64} {
  func.func @mlp_kernel(%arg0: i32, %arg1: i32, %arg2: memref<8x56xf32, #tpu.memory_space<vmem>>, %arg3: memref<56x128xf32, #tpu.memory_space<vmem>>, %arg4: memref<1x128xf32, #tpu.memory_space<vmem>>, %arg5: memref<128x128xf32, #tpu.memory_space<vmem>>, %arg6: memref<1x128xf32, #tpu.memory_space<vmem>>, %arg7: memref<128x128xf32, #tpu.memory_space<vmem>>, %arg8: memref<1x128xf32, #tpu.memory_space<vmem>>, %arg9: memref<128x128xf32, #tpu.memory_space<vmem>>, %arg10: memref<1x128xf32, #tpu.memory_space<vmem>>, %arg11: memref<8x128xf32, #tpu.memory_space<vmem>>, %arg12: memref<8x128xf32, #tpu.memory_space<vmem>>) attributes {dimension_semantics = [#tpu.dimension_semantics<parallel>, #tpu.dimension_semantics<arbitrary>], iteration_bounds = array<i64: 1, 1>, scalar_prefetch = 0 : i64, scratch_operands = 1 : i64, tpu.core_type = #tpu.core_type<tc>, window_params = [{transform_indices = @transform_0, window_bounds = array<i64: 8, 56>}, {transform_indices = @transform_1, window_bounds = array<i64: 56, 128>}, {pipeline_mode = #tpu.pipeline_mode<synchronous>, transform_indices = @transform_2, window_bounds = array<i64: 1, 128>}, {pipeline_mode = #tpu.pipeline_mode<synchronous>, transform_indices = @transform_3, window_bounds = array<i64: 128, 128>}, {pipeline_mode = #tpu.pipeline_mode<synchronous>, transform_indices = @transform_4, window_bounds = array<i64: 1, 128>}, {pipeline_mode = #tpu.pipeline_mode<synchronous>, transform_indices = @transform_5, window_bounds = array<i64: 128, 128>}, {pipeline_mode = #tpu.pipeline_mode<synchronous>, transform_indices = @transform_6, window_bounds = array<i64: 1, 128>}, {pipeline_mode = #tpu.pipeline_mode<synchronous>, transform_indices = @transform_7, window_bounds = array<i64: 128, 128>}, {pipeline_mode = #tpu.pipeline_mode<synchronous>, transform_indices = @transform_8, window_bounds = array<i64: 1, 128>}, {transform_indices = @transform_9, window_bounds = array<i64: 8, 128>}]} {
    %c0_i32 = arith.constant 0 : i32
    %0 = arith.cmpi eq, %arg1, %c0_i32 : i32
    %1 = arith.extui %0 : i1 to i32
    %c0_i32_0 = arith.constant 0 : i32
    %2 = arith.cmpi ne, %1, %c0_i32_0 : i32
    scf.if %2 {
      %cst_10 = arith.constant 0.000000e+00 : f32
      %12 = vector.broadcast %cst_10 : f32 to vector<8x128xf32>
      %c0_11 = arith.constant 0 : index
      %c0_12 = arith.constant 0 : index
      %13 = vector.load %arg12[%c0_11, %c0_12] : memref<8x128xf32, #tpu.memory_space<vmem>>, vector<8x128xf32>
      tpu.vector_store %arg12[%c0_11, %c0_12], %12 {strides = array<i32>} : memref<8x128xf32, #tpu.memory_space<vmem>>, vector<8x128xf32>,
    } else {
    }
    %c0 = arith.constant 0 : index
    %c0_1 = arith.constant 0 : index
    %3 = vector.load %arg3[%c0, %c0_1] : memref<56x128xf32, #tpu.memory_space<vmem>>, vector<56x128xf32>
    %c0_2 = arith.constant 0 : index
    %c0_3 = arith.constant 0 : index
    %4 = vector.load %arg12[%c0_2, %c0_3] : memref<8x128xf32, #tpu.memory_space<vmem>>, vector<8x128xf32>
    %c0_4 = arith.constant 0 : index
    %c0_5 = arith.constant 0 : index
    %5 = vector.load %arg2[%c0_4, %c0_5] : memref<8x56xf32, #tpu.memory_space<vmem>>, vector<8x56xf32>
    %cst = arith.constant dense<0.000000e+00> : vector<8x128xf32>
    %6 = tpu.matmul %5, %3, %cst {dimension_numbers = #tpu.dot_dimension_numbers<[1], [0], [0], [1], [0, 0, 1, 1], [], []>} : vector<8x56xf32>, vector<56x128xf32>, vector<8x128xf32> -> vector<8x128xf32>
    %7 = arith.addf %4, %6 : vector<8x128xf32>
    %c0_6 = arith.constant 0 : index
    %c0_7 = arith.constant 0 : index
    %8 = vector.load %arg12[%c0_6, %c0_7] : memref<8x128xf32, #tpu.memory_space<vmem>>, vector<8x128xf32>
    tpu.vector_store %arg12[%c0_6, %c0_7], %7 {strides = array<i32>} : memref<8x128xf32, #tpu.memory_space<vmem>>, vector<8x128xf32>,
    %c0_i32_8 = arith.constant 0 : i32
    %9 = arith.cmpi eq, %arg1, %c0_i32_8 : i32
    %10 = arith.extui %9 : i1 to i32
    %c0_i32_9 = arith.constant 0 : i32
    %11 = arith.cmpi ne, %10, %c0_i32_9 : i32
    scf.if %11 {
      %c0_10 = arith.constant 0 : index
      %c0_11 = arith.constant 0 : index
      %12 = vector.load %arg4[%c0_10, %c0_11] : memref<1x128xf32, #tpu.memory_space<vmem>>, vector<1x128xf32>
      %c0_12 = arith.constant 0 : index
      %c0_13 = arith.constant 0 : index
      %13 = vector.load %arg12[%c0_12, %c0_13] : memref<8x128xf32, #tpu.memory_space<vmem>>, vector<8x128xf32>
      %14 = vector.broadcast %12 : vector<1x128xf32> to vector<8x128xf32>
      %15 = arith.addf %13, %14 : vector<8x128xf32>
      %16 = math.tanh %15 : vector<8x128xf32>
      %c0_14 = arith.constant 0 : index
      %c0_15 = arith.constant 0 : index
      %17 = vector.load %arg5[%c0_14, %c0_15] : memref<128x128xf32, #tpu.memory_space<vmem>>, vector<128x128xf32>
      %c0_16 = arith.constant 0 : index
      %c0_17 = arith.constant 0 : index
      %18 = vector.load %arg6[%c0_16, %c0_17] : memref<1x128xf32, #tpu.memory_space<vmem>>, vector<1x128xf32>
      %cst_18 = arith.constant dense<0.000000e+00> : vector<8x128xf32>
      %19 = tpu.matmul %16, %17, %cst_18 {dimension_numbers = #tpu.dot_dimension_numbers<[1], [0], [0], [1], [0, 0, 1, 1], [], []>} : vector<8x128xf32>, vector<128x128xf32>, vector<8x128xf32> -> vector<8x128xf32>
      %20 = vector.broadcast %18 : vector<1x128xf32> to vector<8x128xf32>
      %21 = arith.addf %19, %20 : vector<8x128xf32>
      %22 = math.tanh %21 : vector<8x128xf32>
      %c0_19 = arith.constant 0 : index
      %c0_20 = arith.constant 0 : index
      %23 = vector.load %arg7[%c0_19, %c0_20] : memref<128x128xf32, #tpu.memory_space<vmem>>, vector<128x128xf32>
      %c0_21 = arith.constant 0 : index
      %c0_22 = arith.constant 0 : index
      %24 = vector.load %arg8[%c0_21, %c0_22] : memref<1x128xf32, #tpu.memory_space<vmem>>, vector<1x128xf32>
      %cst_23 = arith.constant dense<0.000000e+00> : vector<8x128xf32>
      %25 = tpu.matmul %22, %23, %cst_23 {dimension_numbers = #tpu.dot_dimension_numbers<[1], [0], [0], [1], [0, 0, 1, 1], [], []>} : vector<8x128xf32>, vector<128x128xf32>, vector<8x128xf32> -> vector<8x128xf32>
      %26 = vector.broadcast %24 : vector<1x128xf32> to vector<8x128xf32>
      %27 = arith.addf %25, %26 : vector<8x128xf32>
      %28 = math.tanh %27 : vector<8x128xf32>
      %c0_24 = arith.constant 0 : index
      %c0_25 = arith.constant 0 : index
      %29 = vector.load %arg9[%c0_24, %c0_25] : memref<128x128xf32, #tpu.memory_space<vmem>>, vector<128x128xf32>
      %c0_26 = arith.constant 0 : index
      %c0_27 = arith.constant 0 : index
      %30 = vector.load %arg10[%c0_26, %c0_27] : memref<1x128xf32, #tpu.memory_space<vmem>>, vector<1x128xf32>
      %cst_28 = arith.constant dense<0.000000e+00> : vector<8x128xf32>
      %31 = tpu.matmul %28, %29, %cst_28 {dimension_numbers = #tpu.dot_dimension_numbers<[1], [0], [0], [1], [0, 0, 1, 1], [], []>} : vector<8x128xf32>, vector<128x128xf32>, vector<8x128xf32> -> vector<8x128xf32>
      %32 = vector.broadcast %30 : vector<1x128xf32> to vector<8x128xf32>
      %33 = arith.addf %31, %32 : vector<8x128xf32>
      %c0_29 = arith.constant 0 : index
      %c0_30 = arith.constant 0 : index
      %34 = vector.load %arg11[%c0_29, %c0_30] : memref<8x128xf32, #tpu.memory_space<vmem>>, vector<8x128xf32>
      tpu.vector_store %arg11[%c0_29, %c0_30], %33 {strides = array<i32>} : memref<8x128xf32, #tpu.memory_space<vmem>>, vector<8x128xf32>,
    } else {
    }
    return
  }
  func.func @transform_0(%arg0: i32, %arg1: i32) -> (i32, i32) {
    %c0_i32 = arith.constant 0 : i32
    return %arg0, %arg1 : i32, i32
  }
  func.func @transform_1(%arg0: i32, %arg1: i32) -> (i32, i32) {
    %c0_i32 = arith.constant 0 : i32
    %c0_i32_0 = arith.constant 0 : i32
    return %arg1, %c0_i32 : i32, i32
  }
  func.func @transform_2(%arg0: i32, %arg1: i32) -> (i32, i32) {
    %c0_i32 = arith.constant 0 : i32
    %c0_i32_0 = arith.constant 0 : i32
    %c0_i32_1 = arith.constant 0 : i32
    return %c0_i32, %c0_i32_0 : i32, i32
  }
  func.func @transform_3(%arg0: i32, %arg1: i32) -> (i32, i32) {
    %c0_i32 = arith.constant 0 : i32
    %c0_i32_0 = arith.constant 0 : i32
    %c0_i32_1 = arith.constant 0 : i32
    return %c0_i32, %c0_i32_0 : i32, i32
  }
  func.func @transform_4(%arg0: i32, %arg1: i32) -> (i32, i32) {
    %c0_i32 = arith.constant 0 : i32
    %c0_i32_0 = arith.constant 0 : i32
    %c0_i32_1 = arith.constant 0 : i32
    return %c0_i32, %c0_i32_0 : i32, i32
  }
  func.func @transform_5(%arg0: i32, %arg1: i32) -> (i32, i32) {
    %c0_i32 = arith.constant 0 : i32
    %c0_i32_0 = arith.constant 0 : i32
    %c0_i32_1 = arith.constant 0 : i32
    return %c0_i32, %c0_i32_0 : i32, i32
  }
  func.func @transform_6(%arg0: i32, %arg1: i32) -> (i32, i32) {
    %c0_i32 = arith.constant 0 : i32
    %c0_i32_0 = arith.constant 0 : i32
    %c0_i32_1 = arith.constant 0 : i32
    return %c0_i32, %c0_i32_0 : i32, i32
  }
  func.func @transform_7(%arg0: i32, %arg1: i32) -> (i32, i32) {
    %c0_i32 = arith.constant 0 : i32
    %c0_i32_0 = arith.constant 0 : i32
    %c0_i32_1 = arith.constant 0 : i32
    return %c0_i32, %c0_i32_0 : i32, i32
  }
  func.func @transform_8(%arg0: i32, %arg1: i32) -> (i32, i32) {
    %c0_i32 = arith.constant 0 : i32
    %c0_i32_0 = arith.constant 0 : i32
    %c0_i32_1 = arith.constant 0 : i32
    return %c0_i32, %c0_i32_0 : i32, i32
  }
  func.func @transform_9(%arg0: i32, %arg1: i32) -> (i32, i32) {
    %c0_i32 = arith.constant 0 : i32
    %c0_i32_0 = arith.constant 0 : i32
    return %arg0, %c0_i32 : i32, i32
  }
}

</mosaic_0001>

<llo_original>
// kernel: rnn_ifdcom_pmc_forward.1
$region0: #{rnn_ifdcom_pmc_forward.1}
  #allocation0 [shape = 'u32[]', space=smem, size = 0x4, offset = 0x4, fixed_abs, tag = 'smem constant byte address 0x4 - core index']
  #allocation1 [shape = 'u32[72,128]{1,0:T(1,128)}', space=vmem, size = 0x9000, scoped, tag = 'internal scratch']
  #allocation2 [shape = 'f32[8,128]{1,0:T(8,128)}', space=vmem, size = 0x1000, scoped, tag = 'scratch operand']
  %s0 = inlined_call_operand.vmem [shape: f32[2,56], index: 0, kind: input, shape index: {}]
  %s1 = inlined_call_operand.vmem [shape: f32[56,128], index: 1, kind: input, shape index: {}]
  %s2 = inlined_call_operand.vmem [shape: f32[1,128], index: 2, kind: input, shape index: {}]
  %s3 = inlined_call_operand.vmem [shape: f32[128,128], index: 3, kind: input, shape index: {}]
  %s4 = inlined_call_operand.vmem [shape: f32[1,128], index: 4, kind: input, shape index: {}]
  %s5 = inlined_call_operand.vmem [shape: f32[128,128], index: 5, kind: input, shape index: {}]
  %s6 = inlined_call_operand.vmem [shape: f32[1,128], index: 6, kind: input, shape index: {}]
  %s7 = inlined_call_operand.vmem [shape: f32[128,128], index: 7, kind: input, shape index: {}]
  %s8 = inlined_call_operand.vmem [shape: f32[1,128], index: 8, kind: input, shape index: {}]
  %s9 = inlined_call_operand.hbm [shape: f32[2,128], index: 9, kind: output, shape index: {}]
  %s10 = sld [smem:[#allocation0]]
  $region54: #{rnn_ifdcom_pmc_forward.1} parent=0
    _
  %s12 = ssub.s32 1, %s10
  %s13 = scalar_select 0, %s12, %s10
  $region1: #{rnn_ifdcom_pmc_forward.1} parent=0
    #allocation3 [shape = 'u8[4096]{0}', space=vmem, size = 0x1000, scoped, tag = 'output window, operand 0, single buffered']
    #allocation4 [shape = 's32[1]{0}', space=sflag, size = 0x4, scoped, tag = 'scoped memory for rnn_ifdcom_pmc_forward.1']
    %14 = vsyncpa [#allocation4], 0
    // Predicated region
    $region2: #{rnn_ifdcom_pmc_forward.1} parent=1 // pred_check
      _
    $region3: #{rnn_ifdcom_pmc_forward.1} parent=1 // pred_check_branch
      %16 = sbr.rel (0) target = $region5
    $region4: #{rnn_ifdcom_pmc_forward.1} parent=1 // pred_region
      _
    $region5: #{rnn_ifdcom_pmc_forward.1} parent=1 // pred_fallthru
      _
    // Predicated region
    $region6: #{rnn_ifdcom_pmc_forward.1} parent=1 // pred_check
      _
    $region7: #{rnn_ifdcom_pmc_forward.1} parent=1 // pred_check_branch
      %18 = sbr.rel (0) target = $region9
    $region8: #{rnn_ifdcom_pmc_forward.1} parent=1 // pred_region
      _
    $region9: #{rnn_ifdcom_pmc_forward.1} parent=1 // pred_fallthru
      _
    // Predicated region
    $region10: #{rnn_ifdcom_pmc_forward.1} parent=1 // pred_check
      _
    $region11: #{rnn_ifdcom_pmc_forward.1} parent=1 // pred_check_branch
      %20 = sbr.rel (0) target = $region13
    $region12: #{rnn_ifdcom_pmc_forward.1} parent=1 // pred_region
      _
    $region13: #{rnn_ifdcom_pmc_forward.1} parent=1 // pred_fallthru
      _
    // Predicated region
    $region14: #{rnn_ifdcom_pmc_forward.1} parent=1 // pred_check
      _
    $region15: #{rnn_ifdcom_pmc_forward.1} parent=1 // pred_check_branch
      %22 = sbr.rel (0) target = $region17
    $region16: #{rnn_ifdcom_pmc_forward.1} parent=1 // pred_region
      _
    $region17: #{rnn_ifdcom_pmc_forward.1} parent=1 // pred_fallthru
      _
    // Predicated region
    $region18: #{rnn_ifdcom_pmc_forward.1} parent=1 // pred_check
      _
    $region19: #{rnn_ifdcom_pmc_forward.1} parent=1 // pred_check_branch
      %24 = sbr.rel (0) target = $region21
    $region20: #{rnn_ifdcom_pmc_forward.1} parent=1 // pred_region
      _
    $region21: #{rnn_ifdcom_pmc_forward.1} parent=1 // pred_fallthru
      _
    // Predicated region
    $region22: #{rnn_ifdcom_pmc_forward.1} parent=1 // pred_check
      _
    $region23: #{rnn_ifdcom_pmc_forward.1} parent=1 // pred_check_branch
      %26 = sbr.rel (0) target = $region25
    $region24: #{rnn_ifdcom_pmc_forward.1} parent=1 // pred_region
      _
    $region25: #{rnn_ifdcom_pmc_forward.1} parent=1 // pred_fallthru
      _
    // Predicated region
    $region26: #{rnn_ifdcom_pmc_forward.1} parent=1 // pred_check
      _
    $region27: #{rnn_ifdcom_pmc_forward.1} parent=1 // pred_check_branch
      %28 = sbr.rel (0) target = $region29
    $region28: #{rnn_ifdcom_pmc_forward.1} parent=1 // pred_region
      _
    $region29: #{rnn_ifdcom_pmc_forward.1} parent=1 // pred_fallthru
      _
    // Predicated region
    $region30: #{rnn_ifdcom_pmc_forward.1} parent=1 // pred_check
      _
    $region31: #{rnn_ifdcom_pmc_forward.1} parent=1 // pred_check_branch
      %30 = sbr.rel (0) target = $region33
    $region32: #{rnn_ifdcom_pmc_forward.1} parent=1 // pred_region
      _
    $region33: #{rnn_ifdcom_pmc_forward.1} parent=1 // pred_fallthru
      _
    // Predicated region
    $region34: #{rnn_ifdcom_pmc_forward.1} parent=1 // pred_check
      _
    $region35: #{rnn_ifdcom_pmc_forward.1} parent=1 // pred_check_branch
      %32 = sbr.rel (0) target = $region37
    $region36: #{rnn_ifdcom_pmc_forward.1} parent=1 // pred_region
      _
    $region37: #{rnn_ifdcom_pmc_forward.1} parent=1 // pred_fallthru
      _
    %p33 = scmp.eq.s32.totalorder 0, 0
    // Predicated region
    $region38: #{rnn_ifdcom_pmc_forward.1} parent=1 // pred_check
      %p34 = pneg %p33
    $region39: #{rnn_ifdcom_pmc_forward.1} parent=1 // pred_check_branch
      %36 = sbr.rel (%p34) target = $region41
    $region40: #{rnn_ifdcom_pmc_forward.1} parent=1 // pred_region
      %37 = vst [vmem:[#allocation2] sm:$0xff] 0.0
    $region41: #{rnn_ifdcom_pmc_forward.1} parent=1 // pred_fallthru
      _
    %v38 = vld [vmem:[%s1] sm:$0xff]
    %v39 = vld [vmem:[%s1 + $0x8] sm:$0xff]
    %v40 = vld [vmem:[%s1 + $0x10] sm:$0xff]
    %v41 = vld [vmem:[%s1 + $0x18] sm:$0xff]
    %v42 = vld [vmem:[%s1 + $0x20] sm:$0xff]
    %v43 = vld [vmem:[%s1 + $0x28] sm:$0xff]
    %v44 = vld [vmem:[%s1 + $0x30] sm:$0xff]
    %v45 = vld [vmem:[#allocation2] sm:$0xff]
    %v46 = vld [vmem:[%s0] sm:$0xff]
    %vm47 = vcmask 457728
    %v49 = vsel %vm47, %v46, 0
    %51 = vmatpush.msra.mxu0 0.0
    %52 = vmatpush.msra.mxu0 0.0
    %53 = vmatpush.msra.mxu0 0.0
    %54 = vmatpush.msra.mxu0 0.0
    %55 = vmatpush.msra.mxu0 0.0
    %56 = vmatpush.msra.mxu0 0.0
    %57 = vmatpush.msra.mxu0 0.0
    %58 = vmatpush.msra.mxu0 0.0
    %59 = vmatpush.msra.mxu0 0.0
    %60 = vmatpush.msra.mxu0 %v44
    %61 = vmatpush.msra.mxu0 %v43
    %62 = vmatpush.msra.mxu0 %v42
    %63 = vmatpush.msra.mxu0 %v41
    %64 = vmatpush.msra.mxu0 %v40
    %65 = vmatpush.msra.mxu0 %v39
    %66 = vmatpush.msra.mxu0 %v38
    %67 = vmatmul.f32.gmra.mxu0 %v49
    %v68 = vpop.f32.mrf.mxu0
    %v69 = vadd.f32 0.0, %v68
    %70 = vdwg.mxu0
    %v71 = vadd.f32 %v45, %v69
    %72 = vst [vmem:[#allocation2] sm:$0xff] %v71
    // Predicated region
    $region42: #{rnn_ifdcom_pmc_forward.1} parent=1 // pred_check
      %p73 = pneg %p33
    $region43: #{rnn_ifdcom_pmc_forward.1} parent=1 // pred_check_branch
      %75 = sbr.rel (%p73) target = $region45
    $region44: #{rnn_ifdcom_pmc_forward.1} parent=1 // pred_region
      %v76 = vld [vmem:[%s2] sm:$0x1]
      %v77 = vld [vmem:[#allocation2] sm:$0xff]
      %v79 = vperm.slane %v76, 0
      %v81 = vadd.f32 %v77, %v79
      %v82 = vtanh.pop %v81
      %v83 = vld [vmem:[%s3] sm:$0xff]
      %v84 = vld [vmem:[%s3 + $0x8] sm:$0xff]
      %v85 = vld [vmem:[%s3 + $0x10] sm:$0xff]
      %v86 = vld [vmem:[%s3 + $0x18] sm:$0xff]
      %v87 = vld [vmem:[%s3 + $0x20] sm:$0xff]
      %v88 = vld [vmem:[%s3 + $0x28] sm:$0xff]
      %v89 = vld [vmem:[%s3 + $0x30] sm:$0xff]
      %v90 = vld [vmem:[%s3 + $0x38] sm:$0xff]
      %v91 = vld [vmem:[%s3 + $0x40] sm:$0xff]
      %v92 = vld [vmem:[%s3 + $0x48] sm:$0xff]
      %v93 = vld [vmem:[%s3 + $0x50] sm:$0xff]
      %v94 = vld [vmem:[%s3 + $0x58] sm:$0xff]
      %v95 = vld [vmem:[%s3 + $0x60] sm:$0xff]
      %v96 = vld [vmem:[%s3 + $0x68] sm:$0xff]
      %v97 = vld [vmem:[%s3 + $0x70] sm:$0xff]
      %v98 = vld [vmem:[%s3 + $0x78] sm:$0xff]
      %v99 = vld [vmem:[%s4] sm:$0x1]
      %v101 = vperm.slane %v99, 0
      %103 = vmatpush.msra.mxu0 %v98
      %104 = vmatpush.msra.mxu0 %v97
      %105 = vmatpush.msra.mxu0 %v96
      %106 = vmatpush.msra.mxu0 %v95
      %107 = vmatpush.msra.mxu0 %v94
      %108 = vmatpush.msra.mxu0 %v93
      %109 = vmatpush.msra.mxu0 %v92
      %110 = vmatpush.msra.mxu0 %v91
      %111 = vmatpush.msra.mxu0 %v90
      %112 = vmatpush.msra.mxu0 %v89
      %113 = vmatpush.msra.mxu0 %v88
      %114 = vmatpush.msra.mxu0 %v87
      %115 = vmatpush.msra.mxu0 %v86
      %116 = vmatpush.msra.mxu0 %v85
      %117 = vmatpush.msra.mxu0 %v84
      %118 = vmatpush.msra.mxu0 %v83
      %119 = vmatmul.f32.gmra.mxu0 %v82
      %v120 = vpop.f32.mrf.mxu0
      %v121 = vadd.f32 %v101, %v120
      %122 = vdwg.mxu0
      %v123 = vtanh.pop %v121
      %v124 = vld [vmem:[%s5] sm:$0xff]
      %v125 = vld [vmem:[%s5 + $0x8] sm:$0xff]
      %v126 = vld [vmem:[%s5 + $0x10] sm:$0xff]
      %v127 = vld [vmem:[%s5 + $0x18] sm:$0xff]
      %v128 = vld [vmem:[%s5 + $0x20] sm:$0xff]
      %v129 = vld [vmem:[%s5 + $0x28] sm:$0xff]
      %v130 = vld [vmem:[%s5 + $0x30] sm:$0xff]
      %v131 = vld [vmem:[%s5 + $0x38] sm:$0xff]
      %v132 = vld [vmem:[%s5 + $0x40] sm:$0xff]
      %v133 = vld [vmem:[%s5 + $0x48] sm:$0xff]
      %v134 = vld [vmem:[%s5 + $0x50] sm:$0xff]
      %v135 = vld [vmem:[%s5 + $0x58] sm:$0xff]
      %v136 = vld [vmem:[%s5 + $0x60] sm:$0xff]
      %v137 = vld [vmem:[%s5 + $0x68] sm:$0xff]
      %v138 = vld [vmem:[%s5 + $0x70] sm:$0xff]
      %v139 = vld [vmem:[%s5 + $0x78] sm:$0xff]
      %v140 = vld [vmem:[%s6] sm:$0x1]
      %v142 = vperm.slane %v140, 0
      %144 = vmatpush.msra.mxu0 %v139
      %145 = vmatpush.msra.mxu0 %v138
      %146 = vmatpush.msra.mxu0 %v137
      %147 = vmatpush.msra.mxu0 %v136
      %148 = vmatpush.msra.mxu0 %v135
      %149 = vmatpush.msra.mxu0 %v134
      %150 = vmatpush.msra.mxu0 %v133
      %151 = vmatpush.msra.mxu0 %v132
      %152 = vmatpush.msra.mxu0 %v131
      %153 = vmatpush.msra.mxu0 %v130
      %154 = vmatpush.msra.mxu0 %v129
      %155 = vmatpush.msra.mxu0 %v128
      %156 = vmatpush.msra.mxu0 %v127
      %157 = vmatpush.msra.mxu0 %v126
      %158 = vmatpush.msra.mxu0 %v125
      %159 = vmatpush.msra.mxu0 %v124
      %160 = vmatmul.f32.gmra.mxu0 %v123
      %v161 = vpop.f32.mrf.mxu0
      %v162 = vadd.f32 %v142, %v161
      %163 = vdwg.mxu0
      %v164 = vtanh.pop %v162
      %v165 = vld [vmem:[%s7] sm:$0xff]
      %v166 = vld [vmem:[%s7 + $0x8] sm:$0xff]
      %v167 = vld [vmem:[%s7 + $0x10] sm:$0xff]
      %v168 = vld [vmem:[%s7 + $0x18] sm:$0xff]
      %v169 = vld [vmem:[%s7 + $0x20] sm:$0xff]
      %v170 = vld [vmem:[%s7 + $0x28] sm:$0xff]
      %v171 = vld [vmem:[%s7 + $0x30] sm:$0xff]
      %v172 = vld [vmem:[%s7 + $0x38] sm:$0xff]
      %v173 = vld [vmem:[%s7 + $0x40] sm:$0xff]
      %v174 = vld [vmem:[%s7 + $0x48] sm:$0xff]
      %v175 = vld [vmem:[%s7 + $0x50] sm:$0xff]
      %v176 = vld [vmem:[%s7 + $0x58] sm:$0xff]
      %v177 = vld [vmem:[%s7 + $0x60] sm:$0xff]
      %v178 = vld [vmem:[%s7 + $0x68] sm:$0xff]
      %v179 = vld [vmem:[%s7 + $0x70] sm:$0xff]
      %v180 = vld [vmem:[%s7 + $0x78] sm:$0xff]
      %v181 = vld [vmem:[%s8] sm:$0x1]
      %v183 = vperm.slane %v181, 0
      %185 = vmatpush.msra.mxu0 %v180
      %186 = vmatpush.msra.mxu0 %v179
      %187 = vmatpush.msra.mxu0 %v178
      %188 = vmatpush.msra.mxu0 %v177
      %189 = vmatpush.msra.mxu0 %v176
      %190 = vmatpush.msra.mxu0 %v175
      %191 = vmatpush.msra.mxu0 %v174
      %192 = vmatpush.msra.mxu0 %v173
      %193 = vmatpush.msra.mxu0 %v172
      %194 = vmatpush.msra.mxu0 %v171
      %195 = vmatpush.msra.mxu0 %v170
      %196 = vmatpush.msra.mxu0 %v169
      %197 = vmatpush.msra.mxu0 %v168
      %198 = vmatpush.msra.mxu0 %v167
      %199 = vmatpush.msra.mxu0 %v166
      %200 = vmatpush.msra.mxu0 %v165
      %201 = vmatmul.f32.gmra.mxu0 %v164
      %v202 = vpop.f32.mrf.mxu0
      %v203 = vadd.f32 %v183, %v202
      %204 = vdwg.mxu0
      %205 = vst [vmem:[#allocation3] sm:$0xff] %v203
    $region45: #{rnn_ifdcom_pmc_forward.1} parent=1 // pred_fallthru
      _
    // Predicated region
    $region46: #{rnn_ifdcom_pmc_forward.1} parent=1 // pred_check
      _
    $region47: #{rnn_ifdcom_pmc_forward.1} parent=1 // pred_check_branch
      %207 = sbr.rel (0) target = $region49
    $region48: #{rnn_ifdcom_pmc_forward.1} parent=1 // pred_region
      %209 = vsyncadd [#allocation4], 96
      %s210 = sshll.u32 [#allocation3], 4
      %s211 = int_to_ptr.vmem [resolvable:$true] %s210
      %s212 = sshll.u32 %s9, 4
      %s213 = int_to_ptr.hbm [resolvable:$true] %s212
      %218 = dma.vmem_to_hbm [thread:$0]  %s211, 32, %s213, [#allocation4], 32, 32, 2
    $region49: #{rnn_ifdcom_pmc_forward.1} parent=1 // pred_fallthru
      _
    // Predicated region
    $region50: #{rnn_ifdcom_pmc_forward.1} parent=1 // pred_check
      _
    $region51: #{rnn_ifdcom_pmc_forward.1} parent=1 // pred_check_branch
      %220 = sbr.rel (0) target = $region53
    $region52: #{rnn_ifdcom_pmc_forward.1} parent=1 // pred_region
      %222 = dma.done [#allocation4], 128
    $region53: #{rnn_ifdcom_pmc_forward.1} parent=1 // pred_fallthru
      _
    %223 = vsyncpa [#allocation4], 1

</llo_original>
